<compile_context>
chip_gen: v7x
topology: tpu7x:2x2x1
jax: 0.10.0
libtpu: 0.0.40
codegen_flags: <defaults>
</compile_context>

<pallas_src>
import functools
import math

import jax
import jax.numpy as jnp
from jax.experimental import pallas as pl
from jax.experimental.pallas import tpu as pltpu

POINTS_DIM = 3
EPS = 1e-5
SLOPE = 0.2

# Reduced-precision storage for the HBM-streaming fallback path only.  All BN
# statistics / normalization math stays in f32.  The VMEM-resident whole-stack
# path is pure f32 (no inter-layer HBM traffic, so bf16 buys nothing there).
ACT_DTYPE = jnp.bfloat16

_RESIDENT_BUDGET = 12 * 2 ** 20   # use whole-stack kernel below this footprint
_TILE_CAP = 8192                  # lane-tile cap for the streaming path


def _round_up(x, m):
    return (x + m - 1) // m * m


# --------------------------------------------------------------------------
# Whole-stack VMEM-resident kernel (small / medium problems; demo path).
# --------------------------------------------------------------------------
def _whole_stack_kernel(*refs, hw, hwp, count):
    """All layers fused; activations stay VMEM-resident.

    refs = (x_ref, w_ref_0, ..., w_ref_{n-1}, out_ref)
    x_ref : (C0, L) f32 with L = B * hwp   (batch folded into lanes)
    """
    x_ref, out_ref = refs[0], refs[-1]
    w_refs = refs[1:-1]

    x = x_ref[...]                                   # (C0, L) f32
    L = x.shape[1]
    mask = None
    if hwp != hw:                                    # drop padded spatial lanes
        lane = jax.lax.broadcasted_iota(jnp.int32, (1, L), 1)
        pos = lane - (lane // hwp) * hwp             # lane index within image
        mask = pos < hw
    inv_count = 1.0 / count

    for w_ref in w_refs:
        # 1x1 conv == (Cout, Cin) @ (Cin, L) on the MXU; lane-dense output.
        y = jnp.dot(w_ref[...], x, preferred_element_type=jnp.float32)
        ym = jnp.where(mask, y, 0.0) if mask is not None else y
        mean = jnp.sum(ym, axis=1, keepdims=True) * inv_count     # (Cout, 1)
        d = y - mean
        if mask is not None:
            d = jnp.where(mask, d, 0.0)
        # Sum-of-squared-deviations: avoids the E[y^2]-mean^2 cancellation.
        var = jnp.sum(d * d, axis=1, keepdims=True) * inv_count
        inv = jax.lax.rsqrt(var + EPS)
        z = (y - mean) * inv
        x = jnp.where(z >= 0, z, SLOPE * z)                       # LeakyReLU

    out_ref[...] = x.astype(out_ref.dtype)


# --------------------------------------------------------------------------
# Streaming fallback (large problems): per-layer fused conv + stats kernel.
# --------------------------------------------------------------------------
def _fused_layer_kernel(*refs, apply_bn, mask_tail, hw, tn):
    """[prev-layer BN + LeakyReLU] -> 1x1 conv (w @ x) -> accumulate
    per-(batch, out-channel) sum / sum-of-squares for this layer's BN."""
    if apply_bn:
        x_ref, w_ref, mean_ref, inv_ref, y_ref, psum_ref, psq_ref = refs
    else:
        x_ref, w_ref, y_ref, psum_ref, psq_ref = refs

    j = pl.program_id(1)

    if apply_bn:
        xf = x_ref[0, :, :].astype(jnp.float32)               # (Cin, tn)
        z = (xf - mean_ref[...]) * inv_ref[...]
        x = jnp.where(z >= 0, z, SLOPE * z).astype(ACT_DTYPE)
    else:
        x = x_ref[0, :, :]      # already ACT_DTYPE: no f32 round-trip (review)

    # Weights pre-cast to ACT_DTYPE in the wrapper; f32 accumulation on MXU.
    y = jnp.dot(w_ref[...], x, preferred_element_type=jnp.float32)  # (Cout,tn)
    y_ref[0, :, :] = y.astype(y_ref.dtype)

    @pl.when(j == 0)
    def _():
        psum_ref[...] = jnp.zeros_like(psum_ref)
        psq_ref[...] = jnp.zeros_like(psq_ref)

    if mask_tail:   # drop padded spatial lanes from the BN statistics
        lane = jax.lax.broadcasted_iota(jnp.int32, y.shape, 1)
        y = jnp.where(j * tn + lane < hw, y, 0.0)
    psum_ref[0, :, :] += jnp.sum(y, axis=1, keepdims=True)          # (Cout, 1)
    psq_ref[0, :, :] += jnp.sum(y * y, axis=1, keepdims=True)       # (Cout, 1)


def _bn_lrelu_kernel(y_ref, mean_ref, inv_ref, o_ref):
    """Final layer's BN + LeakyReLU (streaming, lane-dense)."""
    z = (y_ref[0, :, :].astype(jnp.float32) - mean_ref[...]) * inv_ref[...]
    o_ref[0, :, :] = jnp.where(z >= 0, z, SLOPE * z)


def _pick_tn(hwp, cmax, cap=_TILE_CAP, budget=16 * 2 ** 20):
    """Largest lane tile: multiple of 128, divisor of hwp, <= cap, whose
    double-buffered working set stays inside `budget`."""
    m = hwp // 128
    best = 128
    for d in range(1, m + 1):
        tn = 128 * d
        if tn > cap:
            break
        if m % d:
            continue
        est = 4 * cmax * tn * jnp.dtype(ACT_DTYPE).itemsize + 8 * cmax * tn * 4
        if est <= budget:
            best = tn
    return best


def _conv_bn_stats(x3, w, mean, inv, *, hw, tn, count, vmem_limit):
    """One fused layer: (optional prev-BN+LReLU) -> conv -> this layer's stats."""
    B, Cin, HWp = x3.shape
    Cout = w.shape[0]
    grid = (B, HWp // tn)
    apply_bn = mean is not None
    mask_tail = HWp != hw

    in_specs = [pl.BlockSpec((1, Cin, tn), lambda b, j: (b, 0, j)),
                pl.BlockSpec((Cout, Cin), lambda b, j: (0, 0))]
    args = [x3, w]
    if apply_bn:
        in_specs += [pl.BlockSpec((Cin, 1), lambda b, j: (0, 0)),
                     pl.BlockSpec((Cin, 1), lambda b, j: (0, 0))]
        args += [mean, inv]

    y, psum, psq = pl.pallas_call(
        functools.partial(_fused_layer_kernel, apply_bn=apply_bn,
                          mask_tail=mask_tail, hw=hw, tn=tn),
        out_shape=(jax.ShapeDtypeStruct((B, Cout, HWp), ACT_DTYPE),
                   jax.ShapeDtypeStruct((B, Cout, 1), jnp.float32),
                   jax.ShapeDtypeStruct((B, Cout, 1), jnp.float32)),
        grid_spec=pltpu.PrefetchScalarGridSpec(
            num_scalar_prefetch=0, grid=grid,
            in_specs=in_specs,
            out_specs=(pl.BlockSpec((1, Cout, tn), lambda b, j: (b, 0, j)),
                       pl.BlockSpec((1, Cout, 1), lambda b, j: (b, 0, 0)),
                       pl.BlockSpec((1, Cout, 1), lambda b, j: (b, 0, 0)))),
        compiler_params=pltpu.CompilerParams(
            # TODO(synk): pltpu.CORE_PARALLEL on the batch axis for v7x.
            dimension_semantics=("parallel", "arbitrary"),
            vmem_limit_bytes=vmem_limit),
    )(*args)

    # Tiny glue: combine per-batch partials -> BN training statistics.
    s = jnp.sum(psum, axis=0)                                  # (Cout, 1)
    sq = jnp.sum(psq, axis=0)                                  # (Cout, 1)
    new_mean = s / count
    # TODO(synk): Welford-style combine if B*H*W grows very large; the clamp
    # guards the E[y^2]-mean^2 cancellation before adding eps.
    var = jnp.maximum(sq / count - new_mean * new_mean, 0.0)
    new_inv = jax.lax.rsqrt(var + EPS)
    return y, new_mean, new_inv


def _bn_lrelu(y, mean, inv, *, tn, vmem_limit):
    B, Cout, HWp = y.shape
    grid = (B, HWp // tn)
    alias = {0: 0} if y.dtype == jnp.float32 else {}
    return pl.pallas_call(
        _bn_lrelu_kernel,
        out_shape=jax.ShapeDtypeStruct((B, Cout, HWp), jnp.float32),
        grid_spec=pltpu.PrefetchScalarGridSpec(
            num_scalar_prefetch=0, grid=grid,
            in_specs=[pl.BlockSpec((1, Cout, tn), lambda b, j: (b, 0, j)),
                      pl.BlockSpec((Cout, 1), lambda b, j: (0, 0)),
                      pl.BlockSpec((Cout, 1), lambda b, j: (0, 0))],
            out_specs=pl.BlockSpec((1, Cout, tn), lambda b, j: (b, 0, j))),
        compiler_params=pltpu.CompilerParams(
            dimension_semantics=("parallel", "parallel"),
            vmem_limit_bytes=vmem_limit),
        input_output_aliases=alias,
    )(y, mean, inv)


# --------------------------------------------------------------------------
# Module wrapper
# --------------------------------------------------------------------------
class Conv2DPallas:
    """JAX/Pallas port of Conv2D(channel_list, length) (training-mode forward)."""

    def __init__(self, channel_list, length, key):
        channel_list = list(channel_list)
        channel_list[0] = POINTS_DIM + channel_list[0]        # CHANNEL_MAP
        self.channel_list = channel_list
        self.length = length    # GroupBN grouping only reshapes batch; forward unchanged
        self.c0_pad = _round_up(channel_list[0], 8)           # MXU-friendly Cin
        self.weights = []
        for i in range(len(channel_list) - 1):
            key, sub = jax.random.split(key)
            bound = 1.0 / math.sqrt(channel_list[i])          # nn.Conv2d default, 1x1
            wm = jax.random.uniform(
                sub, (channel_list[i + 1], channel_list[i]), jnp.float32,
                minval=-bound, maxval=bound)
            if i == 0 and self.c0_pad != channel_list[0]:
                wm = jnp.pad(wm, ((0, 0), (0, self.c0_pad - channel_list[0])))
            self.weights.append(wm)
        # Pre-cast weights once for the bf16 streaming path (review item).
        self.weights_act = [wm.astype(ACT_DTYPE) for wm in self.weights]

    # --- path 1: whole stack VMEM-resident, single pallas_call ---
    def _forward_resident(self, x, *, hw, hwp):
        b, c, h, w = x.shape
        c0p = self.c0_pad
        c_last = self.channel_list[-1]
        L = b * hwp

        x3 = x.reshape(b, c, hw).astype(jnp.float32)
        pad_c, pad_l = c0p - c, hwp - hw
        if pad_c or pad_l:
            x3 = jnp.pad(x3, ((0, 0), (0, pad_c), (0, pad_l)))
        # Fold batch into lanes: (C0p, B*hwp). Tiny one-time copy for this path.
        xcl = jnp.transpose(x3, (1, 0, 2)).reshape(c0p, L)

        cmax = max(max(self.channel_list), c0p)
        vmem_limit = int(min(32 * 2 ** 20,
                             max(16 * 2 ** 20, 12 * cmax * L * 4)))
        in_specs = [pl.BlockSpec((c0p, L), lambda i: (0, 0))]
        in_specs += [pl.BlockSpec(wm.shape, lambda i: (0, 0))
                     for wm in self.weights]

        out = pl.pallas_call(
            functools.partial(_whole_stack_kernel, hw=hw, hwp=hwp,
                              count=b * hw),
            out_shape=jax.ShapeDtypeStruct((c_last, L), jnp.float32),
            grid_spec=pltpu.PrefetchScalarGridSpec(
                num_scalar_prefetch=0, grid=(1,),
                in_specs=in_specs,
                out_specs=pl.BlockSpec((c_last, L), lambda i: (0, 0))),
            compiler_params=pltpu.CompilerParams(
                vmem_limit_bytes=vmem_limit),
        )(xcl, *self.weights)

        out = out.reshape(c_last, b, hwp)
        if hwp != hw:
            out = out[:, :, :hw]
        return jnp.transpose(out, (1, 0, 2)).reshape(b, c_last, h, w)

    # --- path 2: streaming per-layer fused kernels (large problems) ---
    def _forward_tiled(self, x, *, hw, hwp):
        b, c, h, w = x.shape
        c0p = self.c0_pad
        cmax = max(max(self.channel_list), c0p)
        count = b * hw

        tn = _pick_tn(hwp, cmax)
        act_bytes = jnp.dtype(ACT_DTYPE).itemsize
        ws = 4 * cmax * tn * act_bytes + 8 * cmax * tn * 4 + (2 << 20)
        vmem_limit = int(min(32 * 2 ** 20, max(16 * 2 ** 20, ws)))

        x3 = x.reshape(b, c, hw).astype(ACT_DTYPE)
        pad_c, pad_l = c0p - c, hwp - hw
        if pad_c or pad_l:
            x3 = jnp.pad(x3, ((0, 0), (0, pad_c), (0, pad_l)))

        mean = inv = None
        for wm in self.weights_act:
            # The previous layer's BN + LeakyReLU is fused into this conv.
            x3, mean, inv = _conv_bn_stats(x3, wm, mean, inv, hw=hw, tn=tn,
                                           count=count, vmem_limit=vmem_limit)
        out = _bn_lrelu(x3, mean, inv, tn=tn, vmem_limit=vmem_limit)
        c_last = out.shape[1]
        if hwp != hw:
            out = out[:, :, :hw]
        return out.reshape(b, c_last, h, w)

    def __call__(self, x):
        b, c, h, w = x.shape
        assert c == self.channel_list[0]
        assert b % self.length == 0
        hw = h * w
        hwp = _round_up(hw, 128)
        cmax = max(max(self.channel_list), self.c0_pad)
        L = b * hwp
        # Rough VMEM footprint of the whole-stack path (in/out buffers + temps).
        resident_bytes = (2 * self.c0_pad + 2 * self.channel_list[-1]
                          + 8 * cmax) * L * 4
        if resident_bytes <= _RESIDENT_BUDGET:
            return self._forward_resident(x, hw=hw, hwp=hwp)
        return self._forward_tiled(x, hw=hw, hwp=hwp)


if __name__ == "__main__":
    key = jax.random.PRNGKey(0)
    k_param, k_x = jax.random.split(key)

    channel_list = [4, 16, 32]        # becomes [7, 16, 32] after CHANNEL_MAP
    length = 2
    model = Conv2DPallas(channel_list, length, k_param)

    B, H, W = 4, 16, 16               # B divisible by `length` (GroupBN2d view)
    C_in = POINTS_DIM + 4             # 7
    x = jax.random.normal(k_x, (B, C_in, H, W), dtype=jnp.float32)

    out = jax.block_until_ready(jax.jit(model.__call__)(x))
    assert out.shape == (B, channel_list[-1], H, W)
    assert out.dtype == jnp.float32
    assert bool(jnp.all(jnp.isfinite(out)))
    print("KERNEL_OK")
</pallas_src>

<mosaic_0001>
module attributes {stable_mosaic.version = 11 : i64} {
  func.func @_whole_stack_kernel(%arg0: i32, %arg1: memref<8x1024xf32, #tpu.memory_space<vmem>>, %arg2: memref<16x8xf32, #tpu.memory_space<vmem>>, %arg3: memref<32x16xf32, #tpu.memory_space<vmem>>, %arg4: memref<32x1024xf32, #tpu.memory_space<vmem>>) attributes {dimension_semantics = [#tpu.dimension_semantics<arbitrary>], iteration_bounds = array<i64: 1>, scalar_prefetch = 0 : i64, scratch_operands = 0 : i64, tpu.core_type = #tpu.core_type<tc>, window_params = [{pipeline_mode = #tpu.pipeline_mode<synchronous>, transform_indices = @transform_0, window_bounds = array<i64: 8, 1024>}, {pipeline_mode = #tpu.pipeline_mode<synchronous>, transform_indices = @transform_1, window_bounds = array<i64: 16, 8>}, {pipeline_mode = #tpu.pipeline_mode<synchronous>, transform_indices = @transform_2, window_bounds = array<i64: 32, 16>}, {pipeline_mode = #tpu.pipeline_mode<synchronous>, transform_indices = @transform_3, window_bounds = array<i64: 32, 1024>}]} {
    %c0 = arith.constant 0 : index
    %c0_0 = arith.constant 0 : index
    %0 = vector.load %arg1[%c0, %c0_0] : memref<8x1024xf32, #tpu.memory_space<vmem>>, vector<8x1024xf32>
    %c0_1 = arith.constant 0 : index
    %c0_2 = arith.constant 0 : index
    %1 = vector.load %arg2[%c0_1, %c0_2] : memref<16x8xf32, #tpu.memory_space<vmem>>, vector<16x8xf32>
    %cst = arith.constant dense<0.000000e+00> : vector<16x1024xf32>
    %2 = tpu.matmul %1, %0, %cst {dimension_numbers = #tpu.dot_dimension_numbers<[1], [0], [0], [1], [0, 0, 1, 1], [], []>} : vector<16x8xf32>, vector<8x1024xf32>, vector<16x1024xf32> -> vector<16x1024xf32>
    %cst_3 = arith.constant dense<0.000000e+00> : vector<16xf32>
    %3 = vector.multi_reduction <add>, %2, %cst_3 [1] : vector<16x1024xf32> to vector<16xf32>
    %4 = vector.shape_cast %3 : vector<16xf32> to vector<16x1xf32>
    %cst_4 = arith.constant 9.765625E-4 : f32
    %5 = vector.broadcast %cst_4 : f32 to vector<16x1xf32>
    %6 = arith.mulf %4, %5 : vector<16x1xf32>
    %7 = vector.broadcast %6 : vector<16x1xf32> to vector<16x1024xf32>
    %8 = arith.subf %2, %7 : vector<16x1024xf32>
    %9 = arith.mulf %8, %8 : vector<16x1024xf32>
    %cst_5 = arith.constant dense<0.000000e+00> : vector<16xf32>
    %10 = vector.multi_reduction <add>, %9, %cst_5 [1] : vector<16x1024xf32> to vector<16xf32>
    %11 = vector.shape_cast %10 : vector<16xf32> to vector<16x1xf32>
    %cst_6 = arith.constant 9.765625E-4 : f32
    %12 = vector.broadcast %cst_6 : f32 to vector<16x1xf32>
    %13 = arith.mulf %11, %12 : vector<16x1xf32>
    %cst_7 = arith.constant 9.99999974E-6 : f32
    %14 = vector.broadcast %cst_7 : f32 to vector<16x1xf32>
    %15 = arith.addf %13, %14 : vector<16x1xf32>
    %16 = math.rsqrt %15 : vector<16x1xf32>
    %17 = vector.broadcast %6 : vector<16x1xf32> to vector<16x1024xf32>
    %18 = arith.subf %2, %17 : vector<16x1024xf32>
    %19 = vector.broadcast %16 : vector<16x1xf32> to vector<16x1024xf32>
    %20 = arith.mulf %18, %19 : vector<16x1024xf32>
    %cst_8 = arith.constant 0.000000e+00 : f32
    %21 = vector.broadcast %cst_8 : f32 to vector<16x1024xf32>
    %22 = arith.cmpf oge, %20, %21 : vector<16x1024xf32>
    %cst_9 = arith.constant 2.000000e-01 : f32
    %23 = vector.broadcast %cst_9 : f32 to vector<16x1024xf32>
    %24 = arith.mulf %23, %20 : vector<16x1024xf32>
    %25 = arith.select %22, %20, %24 : vector<16x1024xi1>, vector<16x1024xf32>
    %c0_10 = arith.constant 0 : index
    %c0_11 = arith.constant 0 : index
    %26 = vector.load %arg3[%c0_10, %c0_11] : memref<32x16xf32, #tpu.memory_space<vmem>>, vector<32x16xf32>
    %cst_12 = arith.constant dense<0.000000e+00> : vector<32x1024xf32>
    %27 = tpu.matmul %26, %25, %cst_12 {dimension_numbers = #tpu.dot_dimension_numbers<[1], [0], [0], [1], [0, 0, 1, 1], [], []>} : vector<32x16xf32>, vector<16x1024xf32>, vector<32x1024xf32> -> vector<32x1024xf32>
    %cst_13 = arith.constant dense<0.000000e+00> : vector<32xf32>
    %28 = vector.multi_reduction <add>, %27, %cst_13 [1] : vector<32x1024xf32> to vector<32xf32>
    %29 = vector.shape_cast %28 : vector<32xf32> to vector<32x1xf32>
    %cst_14 = arith.constant 9.765625E-4 : f32
    %30 = vector.broadcast %cst_14 : f32 to vector<32x1xf32>
    %31 = arith.mulf %29, %30 : vector<32x1xf32>
    %32 = vector.broadcast %31 : vector<32x1xf32> to vector<32x1024xf32>
    %33 = arith.subf %27, %32 : vector<32x1024xf32>
    %34 = arith.mulf %33, %33 : vector<32x1024xf32>
    %cst_15 = arith.constant dense<0.000000e+00> : vector<32xf32>
    %35 = vector.multi_reduction <add>, %34, %cst_15 [1] : vector<32x1024xf32> to vector<32xf32>
    %36 = vector.shape_cast %35 : vector<32xf32> to vector<32x1xf32>
    %cst_16 = arith.constant 9.765625E-4 : f32
    %37 = vector.broadcast %cst_16 : f32 to vector<32x1xf32>
    %38 = arith.mulf %36, %37 : vector<32x1xf32>
    %cst_17 = arith.constant 9.99999974E-6 : f32
    %39 = vector.broadcast %cst_17 : f32 to vector<32x1xf32>
    %40 = arith.addf %38, %39 : vector<32x1xf32>
    %41 = math.rsqrt %40 : vector<32x1xf32>
    %42 = vector.broadcast %31 : vector<32x1xf32> to vector<32x1024xf32>
    %43 = arith.subf %27, %42 : vector<32x1024xf32>
    %44 = vector.broadcast %41 : vector<32x1xf32> to vector<32x1024xf32>
    %45 = arith.mulf %43, %44 : vector<32x1024xf32>
    %cst_18 = arith.constant 0.000000e+00 : f32
    %46 = vector.broadcast %cst_18 : f32 to vector<32x1024xf32>
    %47 = arith.cmpf oge, %45, %46 : vector<32x1024xf32>
    %cst_19 = arith.constant 2.000000e-01 : f32
    %48 = vector.broadcast %cst_19 : f32 to vector<32x1024xf32>
    %49 = arith.mulf %48, %45 : vector<32x1024xf32>
    %50 = arith.select %47, %45, %49 : vector<32x1024xi1>, vector<32x1024xf32>
    %c0_20 = arith.constant 0 : index
    %c0_21 = arith.constant 0 : index
    %51 = vector.load %arg4[%c0_20, %c0_21] : memref<32x1024xf32, #tpu.memory_space<vmem>>, vector<32x1024xf32>
    tpu.vector_store %arg4[%c0_20, %c0_21], %50 {strides = array<i32>} : memref<32x1024xf32, #tpu.memory_space<vmem>>, vector<32x1024xf32>,
    return
  }
  func.func @transform_0(%arg0: i32) -> (i32, i32) {
    %c0_i32 = arith.constant 0 : i32
    %c0_i32_0 = arith.constant 0 : i32
    %c0_i32_1 = arith.constant 0 : i32
    return %c0_i32, %c0_i32_0 : i32, i32
  }
  func.func @transform_1(%arg0: i32) -> (i32, i32) {
    %c0_i32 = arith.constant 0 : i32
    %c0_i32_0 = arith.constant 0 : i32
    %c0_i32_1 = arith.constant 0 : i32
    return %c0_i32, %c0_i32_0 : i32, i32
  }
  func.func @transform_2(%arg0: i32) -> (i32, i32) {
    %c0_i32 = arith.constant 0 : i32
    %c0_i32_0 = arith.constant 0 : i32
    %c0_i32_1 = arith.constant 0 : i32
    return %c0_i32, %c0_i32_0 : i32, i32
  }
  func.func @transform_3(%arg0: i32) -> (i32, i32) {
    %c0_i32 = arith.constant 0 : i32
    %c0_i32_0 = arith.constant 0 : i32
    %c0_i32_1 = arith.constant 0 : i32
    return %c0_i32, %c0_i32_0 : i32, i32
  }
}

</mosaic_0001>

<llo_original>
// kernel: a_call__.1
$region0: #{a_call__.1}
  #allocation0 [shape = 'u32[]', space=smem, size = 0x4, offset = 0x4, fixed_abs, tag = 'smem constant byte address 0x4 - core index']
  #allocation1 [shape = 'u32[144,128]{1,0:T(1,128)}', space=vmem, size = 0x12000, scoped, tag = 'internal scratch']
  %s0 = inlined_call_operand.vmem [shape: f32[8,1024], index: 0, kind: input, shape index: {}]
  %s1 = inlined_call_operand.vmem [shape: f32[16,8], index: 1, kind: input, shape index: {}]
  %s2 = inlined_call_operand.vmem [shape: f32[32,16], index: 2, kind: input, shape index: {}]
  %s3 = inlined_call_operand.vmem [shape: f32[32,1024], index: 3, kind: output, shape index: {}]
  %s4 = sld [smem:[#allocation0]]
  $region22: #{a_call__.1} parent=0
    _
  %s6 = ssub.s32 1, %s4
  %s7 = scalar_select 0, %s6, %s4
  // Predicated region
  $region2: #{a_call__.1} parent=0 // pred_check
    _
  $region3: #{a_call__.1} parent=0 // pred_check_branch
    %9 = sbr.rel (0) target = $region5
  $region4: #{a_call__.1} parent=0 // pred_region
    _
  $region5: #{a_call__.1} parent=0 // pred_fallthru
    _
  // Predicated region
  $region6: #{a_call__.1} parent=0 // pred_check
    _
  $region7: #{a_call__.1} parent=0 // pred_check_branch
    %11 = sbr.rel (0) target = $region9
  $region8: #{a_call__.1} parent=0 // pred_region
    _
  $region9: #{a_call__.1} parent=0 // pred_fallthru
    _
  // Predicated region
  $region10: #{a_call__.1} parent=0 // pred_check
    _
  $region11: #{a_call__.1} parent=0 // pred_check_branch
    %13 = sbr.rel (0) target = $region13
  $region12: #{a_call__.1} parent=0 // pred_region
    _
  $region13: #{a_call__.1} parent=0 // pred_fallthru
    _
  %v14 = vld [vmem:[%s0] sm:$0xff]
  %v15 = vld [vmem:[%s0 + $0x8] sm:$0xff]
  %v16 = vld [vmem:[%s0 + $0x10] sm:$0xff]
  %v17 = vld [vmem:[%s0 + $0x18] sm:$0xff]
  %v18 = vld [vmem:[%s0 + $0x20] sm:$0xff]
  %v19 = vld [vmem:[%s0 + $0x28] sm:$0xff]
  %v20 = vld [vmem:[%s0 + $0x30] sm:$0xff]
  %v21 = vld [vmem:[%s0 + $0x38] sm:$0xff]
  %v22 = vld [vmem:[%s1] sm:$0xff]
  %v23 = vld [vmem:[%s1 + $0x8] sm:$0xff]
  %vm24 = vcmask 64512
  %v26 = vsel %vm24, %v22, 0
  %v29 = vsel %vm24, %v23, 0
  %31 = vmatprep.subr.mxu0 %v15
  %32 = vmatpush1.msra.mxu0 %v14
  %33 = vmatprep.subr.mxu0 0.0
  %34 = vmatpush1.msra.mxu0 0.0
  %35 = vmatprep.subr.mxu0 0.0
  %36 = vmatpush1.msra.mxu0 0.0
  %37 = vmatprep.subr.mxu0 0.0
  %38 = vmatpush1.msra.mxu0 0.0
  %39 = vmatprep.subr.mxu0 0.0
  %40 = vmatpush1.msra.mxu0 0.0
  %41 = vmatprep.subr.mxu0 0.0
  %42 = vmatpush1.msra.mxu0 0.0
  %43 = vmatprep.subr.mxu0 0.0
  %44 = vmatpush1.msra.mxu0 0.0
  %45 = vmatprep.subr.mxu0 0.0
  %46 = vmatpush1.msra.mxu0 0.0
  %47 = vmatprep.subr.mxu0 0.0
  %48 = vmatpush1.msra.mxu0 0.0
  %49 = vmatprep.subr.mxu0 0.0
  %50 = vmatpush1.msra.mxu0 0.0
  %51 = vmatprep.subr.mxu0 0.0
  %52 = vmatpush1.msra.mxu0 0.0
  %53 = vmatprep.subr.mxu0 0.0
  %54 = vmatpush1.msra.mxu0 0.0
  %55 = vmatprep.subr.mxu0 0.0
  %56 = vmatpush1.msra.mxu0 0.0
  %57 = vmatprep.subr.mxu0 0.0
  %58 = vmatpush1.msra.mxu0 0.0
  %59 = vmatprep.subr.mxu0 0.0
  %60 = vmatpush1.msra.mxu0 0.0
  %61 = vmatprep.subr.mxu0 0.0
  %62 = vmatpush1.msra.mxu0 0.0
  %63 = vmatprep.subr.mxu0 0.0
  %64 = vmatpush1.msra.mxu0 0.0
  %65 = vmatprep.subr.mxu0 0.0
  %66 = vmatpush1.msra.mxu0 0.0
  %67 = vmatprep.subr.mxu0 0.0
  %68 = vmatpush1.msra.mxu0 0.0
  %69 = vmatprep.subr.mxu0 0.0
  %70 = vmatpush1.msra.mxu0 0.0
  %71 = vmatprep.subr.mxu0 0.0
  %72 = vmatpush1.msra.mxu0 0.0
  %73 = vmatprep.subr.mxu0 0.0
  %74 = vmatpush1.msra.mxu0 0.0
  %75 = vmatprep.subr.mxu0 0.0
  %76 = vmatpush1.msra.mxu0 0.0
  %77 = vmatprep.subr.mxu0 0.0
  %78 = vmatpush1.msra.mxu0 0.0
  %79 = vmatprep.subr.mxu0 0.0
  %80 = vmatpush1.msra.mxu0 0.0
  %81 = vmatprep.subr.mxu0 0.0
  %82 = vmatpush1.msra.mxu0 0.0
  %83 = vmatprep.subr.mxu0 0.0
  %84 = vmatpush1.msra.mxu0 0.0
  %85 = vmatprep.subr.mxu0 0.0
  %86 = vmatpush1.msra.mxu0 0.0
  %87 = vmatprep.subr.mxu0 0.0
  %88 = vmatpush1.msra.mxu0 0.0
  %89 = vmatprep.subr.mxu0 0.0
  %90 = vmatpush1.msra.mxu0 0.0
  %91 = vmatprep.subr.mxu0 0.0
  %92 = vmatpush1.msra.mxu0 0.0
  %93 = vmatprep.subr.mxu0 0.0
  %94 = vmatpush1.msra.mxu0 0.0
  %95 = vmatprep.mubr.f32.mxu0 0.0
  %96 = vmatmul.mubr.f32.gmra.mrb[0].mxu0 %v26
  %v97 = vpop.f32.mrb[0].mxu0
  %v98 = vadd.f32 0.0, %v97
  %v99 = vpop.f32.mrb[0].mxu0
  %v100 = vadd.f32 0.0, %v99
  %101 = vmatprep.mubr.f32.mxu0 0.0
  %102 = vmatmul.mubr.f32.gmra.mrb[0].mxu0 %v29
  %v103 = vpop.f32.mrb[0].mxu0
  %v104 = vadd.f32 0.0, %v103
  %v105 = vpop.f32.mrb[0].mxu0
  %v106 = vadd.f32 0.0, %v105
  %107 = vdwg.mxu0
  %108 = vmatprep.subr.mxu0 %v17
  %109 = vmatpush1.msra.mxu0 %v16
  %110 = vmatprep.subr.mxu0 0.0
  %111 = vmatpush1.msra.mxu0 0.0
  %112 = vmatprep.subr.mxu0 0.0
  %113 = vmatpush1.msra.mxu0 0.0
  %114 = vmatprep.subr.mxu0 0.0
  %115 = vmatpush1.msra.mxu0 0.0
  %116 = vmatprep.subr.mxu0 0.0
  %117 = vmatpush1.msra.mxu0 0.0
  %118 = vmatprep.subr.mxu0 0.0
  %119 = vmatpush1.msra.mxu0 0.0
  %120 = vmatprep.subr.mxu0 0.0
  %121 = vmatpush1.msra.mxu0 0.0
  %122 = vmatprep.subr.mxu0 0.0
  %123 = vmatpush1.msra.mxu0 0.0
  %124 = vmatprep.subr.mxu0 0.0
  %125 = vmatpush1.msra.mxu0 0.0
  %126 = vmatprep.subr.mxu0 0.0
  %127 = vmatpush1.msra.mxu0 0.0
  %128 = vmatprep.subr.mxu0 0.0
  %129 = vmatpush1.msra.mxu0 0.0
  %130 = vmatprep.subr.mxu0 0.0
  %131 = vmatpush1.msra.mxu0 0.0
  %132 = vmatprep.subr.mxu0 0.0
  %133 = vmatpush1.msra.mxu0 0.0
  %134 = vmatprep.subr.mxu0 0.0
  %135 = vmatpush1.msra.mxu0 0.0
  %136 = vmatprep.subr.mxu0 0.0
  %137 = vmatpush1.msra.mxu0 0.0
  %138 = vmatprep.subr.mxu0 0.0
  %139 = vmatpush1.msra.mxu0 0.0
  %140 = vmatprep.subr.mxu0 0.0
  %141 = vmatpush1.msra.mxu0 0.0
  %142 = vmatprep.subr.mxu0 0.0
  %143 = vmatpush1.msra.mxu0 0.0
  %144 = vmatprep.subr.mxu0 0.0
  %145 = vmatpush1.msra.mxu0 0.0
  %146 = vmatprep.subr.mxu0 0.0
  %147 = vmatpush1.msra.mxu0 0.0
  %148 = vmatprep.subr.mxu0 0.0
  %149 = vmatpush1.msra.mxu0 0.0
  %150 = vmatprep.subr.mxu0 0.0
  %151 = vmatpush1.msra.mxu0 0.0
  %152 = vmatprep.subr.mxu0 0.0
  %153 = vmatpush1.msra.mxu0 0.0
  %154 = vmatprep.subr.mxu0 0.0
  %155 = vmatpush1.msra.mxu0 0.0
  %156 = vmatprep.subr.mxu0 0.0
  %157 = vmatpush1.msra.mxu0 0.0
  %158 = vmatprep.subr.mxu0 0.0
  %159 = vmatpush1.msra.mxu0 0.0
  %160 = vmatprep.subr.mxu0 0.0
  %161 = vmatpush1.msra.mxu0 0.0
  %162 = vmatprep.subr.mxu0 0.0
  %163 = vmatpush1.msra.mxu0 0.0
  %164 = vmatprep.subr.mxu0 0.0
  %165 = vmatpush1.msra.mxu0 0.0
  %166 = vmatprep.subr.mxu0 0.0
  %167 = vmatpush1.msra.mxu0 0.0
  %168 = vmatprep.subr.mxu0 0.0
  %169 = vmatpush1.msra.mxu0 0.0
  %170 = vmatprep.subr.mxu0 0.0
  %171 = vmatpush1.msra.mxu0 0.0
  %172 = vmatprep.mubr.f32.mxu0 0.0
  %173 = vmatmul.mubr.f32.gmra.mrb[0].mxu0 %v26
  %v174 = vpop.f32.mrb[0].mxu0
  %v175 = vadd.f32 0.0, %v174
  %v176 = vpop.f32.mrb[0].mxu0
  %v177 = vadd.f32 0.0, %v176
  %178 = vmatprep.mubr.f32.mxu0 0.0
  %179 = vmatmul.mubr.f32.gmra.mrb[0].mxu0 %v29
  %v180 = vpop.f32.mrb[0].mxu0
  %v181 = vadd.f32 0.0, %v180
  %v182 = vpop.f32.mrb[0].mxu0
  %v183 = vadd.f32 0.0, %v182
  %184 = vdwg.mxu0
  %185 = vmatprep.subr.mxu0 %v19
  %186 = vmatpush1.msra.mxu0 %v18
  %187 = vmatprep.subr.mxu0 0.0
  %188 = vmatpush1.msra.mxu0 0.0
  %189 = vmatprep.subr.mxu0 0.0
  %190 = vmatpush1.msra.mxu0 0.0
  %191 = vmatprep.subr.mxu0 0.0
  %192 = vmatpush1.msra.mxu0 0.0
  %193 = vmatprep.subr.mxu0 0.0
  %194 = vmatpush1.msra.mxu0 0.0
  %195 = vmatprep.subr.mxu0 0.0
  %196 = vmatpush1.msra.mxu0 0.0
  %197 = vmatprep.subr.mxu0 0.0
  %198 = vmatpush1.msra.mxu0 0.0
  %199 = vmatprep.subr.mxu0 0.0
  %200 = vmatpush1.msra.mxu0 0.0
  %201 = vmatprep.subr.mxu0 0.0
  %202 = vmatpush1.msra.mxu0 0.0
  %203 = vmatprep.subr.mxu0 0.0
  %204 = vmatpush1.msra.mxu0 0.0
  %205 = vmatprep.subr.mxu0 0.0
  %206 = vmatpush1.msra.mxu0 0.0
  %207 = vmatprep.subr.mxu0 0.0
  %208 = vmatpush1.msra.mxu0 0.0
  %209 = vmatprep.subr.mxu0 0.0
  %210 = vmatpush1.msra.mxu0 0.0
  %211 = vmatprep.subr.mxu0 0.0
  %212 = vmatpush1.msra.mxu0 0.0
  %213 = vmatprep.subr.mxu0 0.0
  %214 = vmatpush1.msra.mxu0 0.0
  %215 = vmatprep.subr.mxu0 0.0
  %216 = vmatpush1.msra.mxu0 0.0
  %217 = vmatprep.subr.mxu0 0.0
  %218 = vmatpush1.msra.mxu0 0.0
  %219 = vmatprep.subr.mxu0 0.0
  %220 = vmatpush1.msra.mxu0 0.0
  %221 = vmatprep.subr.mxu0 0.0
  %222 = vmatpush1.msra.mxu0 0.0
  %223 = vmatprep.subr.mxu0 0.0
  %224 = vmatpush1.msra.mxu0 0.0
  %225 = vmatprep.subr.mxu0 0.0
  %226 = vmatpush1.msra.mxu0 0.0
  %227 = vmatprep.subr.mxu0 0.0
  %228 = vmatpush1.msra.mxu0 0.0
  %229 = vmatprep.subr.mxu0 0.0
  %230 = vmatpush1.msra.mxu0 0.0
  %231 = vmatprep.subr.mxu0 0.0
  %232 = vmatpush1.msra.mxu0 0.0
  %233 = vmatprep.subr.mxu0 0.0
  %234 = vmatpush1.msra.mxu0 0.0
  %235 = vmatprep.subr.mxu0 0.0
  %236 = vmatpush1.msra.mxu0 0.0
  %237 = vmatprep.subr.mxu0 0.0
  %238 = vmatpush1.msra.mxu0 0.0
  %239 = vmatprep.subr.mxu0 0.0
  %240 = vmatpush1.msra.mxu0 0.0
  %241 = vmatprep.subr.mxu0 0.0
  %242 = vmatpush1.msra.mxu0 0.0
  %243 = vmatprep.subr.mxu0 0.0
  %244 = vmatpush1.msra.mxu0 0.0
  %245 = vmatprep.subr.mxu0 0.0
  %246 = vmatpush1.msra.mxu0 0.0
  %247 = vmatprep.subr.mxu0 0.0
  %248 = vmatpush1.msra.mxu0 0.0
  %249 = vmatprep.mubr.f32.mxu0 0.0
  %250 = vmatmul.mubr.f32.gmra.mrb[0].mxu0 %v26
  %v251 = vpop.f32.mrb[0].mxu0
  %v252 = vadd.f32 0.0, %v251
  %v253 = vpop.f32.mrb[0].mxu0
  %v254 = vadd.f32 0.0, %v253
  %255 = vmatprep.mubr.f32.mxu0 0.0
  %256 = vmatmul.mubr.f32.gmra.mrb[0].mxu0 %v29
  %v257 = vpop.f32.mrb[0].mxu0
  %v258 = vadd.f32 0.0, %v257
  %v259 = vpop.f32.mrb[0].mxu0
  %v260 = vadd.f32 0.0, %v259
  %261 = vdwg.mxu0
  %262 = vmatprep.subr.mxu0 %v21
  %263 = vmatpush1.msra.mxu0 %v20
  %264 = vmatprep.subr.mxu0 0.0
  %265 = vmatpush1.msra.mxu0 0.0
  %266 = vmatprep.subr.mxu0 0.0
  %267 = vmatpush1.msra.mxu0 0.0
  %268 = vmatprep.subr.mxu0 0.0
  %269 = vmatpush1.msra.mxu0 0.0
  %270 = vmatprep.subr.mxu0 0.0
  %271 = vmatpush1.msra.mxu0 0.0
  %272 = vmatprep.subr.mxu0 0.0
  %273 = vmatpush1.msra.mxu0 0.0
  %274 = vmatprep.subr.mxu0 0.0
  %275 = vmatpush1.msra.mxu0 0.0
  %276 = vmatprep.subr.mxu0 0.0
  %277 = vmatpush1.msra.mxu0 0.0
  %278 = vmatprep.subr.mxu0 0.0
  %279 = vmatpush1.msra.mxu0 0.0
  %280 = vmatprep.subr.mxu0 0.0
  %281 = vmatpush1.msra.mxu0 0.0
  %282 = vmatprep.subr.mxu0 0.0
  %283 = vmatpush1.msra.mxu0 0.0
  %284 = vmatprep.subr.mxu0 0.0
  %285 = vmatpush1.msra.mxu0 0.0
  %286 = vmatprep.subr.mxu0 0.0
  %287 = vmatpush1.msra.mxu0 0.0
  %288 = vmatprep.subr.mxu0 0.0
  %289 = vmatpush1.msra.mxu0 0.0
  %290 = vmatprep.subr.mxu0 0.0
  %291 = vmatpush1.msra.mxu0 0.0
  %292 = vmatprep.subr.mxu0 0.0
  %293 = vmatpush1.msra.mxu0 0.0
  %294 = vmatprep.subr.mxu0 0.0
  %295 = vmatpush1.msra.mxu0 0.0
  %296 = vmatprep.subr.mxu0 0.0
  %297 = vmatpush1.msra.mxu0 0.0
  %298 = vmatprep.subr.mxu0 0.0
  %299 = vmatpush1.msra.mxu0 0.0
  %300 = vmatprep.subr.mxu0 0.0
  %301 = vmatpush1.msra.mxu0 0.0
  %302 = vmatprep.subr.mxu0 0.0
  %303 = vmatpush1.msra.mxu0 0.0
  %304 = vmatprep.subr.mxu0 0.0
  %305 = vmatpush1.msra.mxu0 0.0
  %306 = vmatprep.subr.mxu0 0.0
  %307 = vmatpush1.msra.mxu0 0.0
  %308 = vmatprep.subr.mxu0 0.0
  %309 = vmatpush1.msra.mxu0 0.0
  %310 = vmatprep.subr.mxu0 0.0
  %311 = vmatpush1.msra.mxu0 0.0
  %312 = vmatprep.subr.mxu0 0.0
  %313 = vmatpush1.msra.mxu0 0.0
  %314 = vmatprep.subr.mxu0 0.0
  %315 = vmatpush1.msra.mxu0 0.0
  %316 = vmatprep.subr.mxu0 0.0
  %317 = vmatpush1.msra.mxu0 0.0
  %318 = vmatprep.subr.mxu0 0.0
  %319 = vmatpush1.msra.mxu0 0.0
  %320 = vmatprep.subr.mxu0 0.0
  %321 = vmatpush1.msra.mxu0 0.0
  %322 = vmatprep.subr.mxu0 0.0
  %323 = vmatpush1.msra.mxu0 0.0
  %324 = vmatprep.subr.mxu0 0.0
  %325 = vmatpush1.msra.mxu0 0.0
  %326 = vmatprep.mubr.f32.mxu0 0.0
  %327 = vmatmul.mubr.f32.gmra.mrb[0].mxu0 %v26
  %v328 = vpop.f32.mrb[0].mxu0
  %v329 = vadd.f32 0.0, %v328
  %v330 = vpop.f32.mrb[0].mxu0
  %v331 = vadd.f32 0.0, %v330
  %332 = vmatprep.mubr.f32.mxu0 0.0
  %333 = vmatmul.mubr.f32.gmra.mrb[0].mxu0 %v29
  %v334 = vpop.f32.mrb[0].mxu0
  %v335 = vadd.f32 0.0, %v334
  %v336 = vpop.f32.mrb[0].mxu0
  %v337 = vadd.f32 0.0, %v336
  %338 = vdwg.mxu0
  %v339 = vadd.f32 %v98, %v100
  %v340 = vadd.f32 %v339, %v175
  %v341 = vadd.f32 %v340, %v177
  %v342 = vadd.f32 %v341, %v252
  %v343 = vadd.f32 %v342, %v254
  %v344 = vadd.f32 %v343, %v329
  %v345 = vadd.f32 %v344, %v331
  %346 = vadd.xlane.f32.xlu0 %v345
  %v347 = vpop.xlane.xlu0 %346
  %v348 = vadd.f32 %v104, %v106
  %v349 = vadd.f32 %v348, %v181
  %v350 = vadd.f32 %v349, %v183
  %v351 = vadd.f32 %v350, %v258
  %v352 = vadd.f32 %v351, %v260
  %v353 = vadd.f32 %v352, %v335
  %v354 = vadd.f32 %v353, %v337
  %355 = vadd.xlane.f32.xlu0 %v354
  %v356 = vpop.xlane.xlu0 %355
  %v357 = vmul.f32 %v347, 0.0009765625
  %v358 = vmul.f32 %v356, 0.0009765625
  %v359 = vsub.f32 %v98, %v357
  %v360 = vsub.f32 %v100, %v357
  %v361 = vsub.f32 %v175, %v357
  %v362 = vsub.f32 %v177, %v357
  %v363 = vsub.f32 %v252, %v357
  %v364 = vsub.f32 %v254, %v357
  %v365 = vsub.f32 %v329, %v357
  %v366 = vsub.f32 %v331, %v357
  %v367 = vsub.f32 %v104, %v358
  %v368 = vsub.f32 %v106, %v358
  %v369 = vsub.f32 %v181, %v358
  %v370 = vsub.f32 %v183, %v358
  %v371 = vsub.f32 %v258, %v358
  %v372 = vsub.f32 %v260, %v358
  %v373 = vsub.f32 %v335, %v358
  %v374 = vsub.f32 %v337, %v358
  %v375 = vmul.f32 %v359, %v359
  %v376 = vmul.f32 %v360, %v360
  %v377 = vmul.f32 %v361, %v361
  %v378 = vmul.f32 %v362, %v362
  %v379 = vmul.f32 %v363, %v363
  %v380 = vmul.f32 %v364, %v364
  %v381 = vmul.f32 %v365, %v365
  %v382 = vmul.f32 %v366, %v366
  %v383 = vmul.f32 %v367, %v367
  %v384 = vmul.f32 %v368, %v368
  %v385 = vmul.f32 %v369, %v369
  %v386 = vmul.f32 %v370, %v370
  %v387 = vmul.f32 %v371, %v371
  %v388 = vmul.f32 %v372, %v372
  %v389 = vmul.f32 %v373, %v373
  %v390 = vmul.f32 %v374, %v374
  %v391 = vadd.f32 %v375, %v376
  %v392 = vadd.f32 %v391, %v377
  %v393 = vadd.f32 %v392, %v378
  %v394 = vadd.f32 %v393, %v379
  %v395 = vadd.f32 %v394, %v380
  %v396 = vadd.f32 %v395, %v381
  %v397 = vadd.f32 %v396, %v382
  %398 = vadd.xlane.f32.xlu0 %v397
  %v399 = vpop.xlane.xlu0 %398
  %v400 = vadd.f32 %v383, %v384
  %v401 = vadd.f32 %v400, %v385
  %v402 = vadd.f32 %v401, %v386
  %v403 = vadd.f32 %v402, %v387
  %v404 = vadd.f32 %v403, %v388
  %v405 = vadd.f32 %v404, %v389
  %v406 = vadd.f32 %v405, %v390
  %407 = vadd.xlane.f32.xlu0 %v406
  %v408 = vpop.xlane.xlu0 %407
  %v409 = vmul.f32 %v399, 0.0009765625
  %v410 = vmul.f32 %v408, 0.0009765625
  %v411 = vadd.f32 %v409, 1e-05
  %v412 = vadd.f32 %v410, 1e-05
  %v413 = vrsqrt.pop %v411
  %v414 = vrsqrt.pop %v412
  %v415 = vmul.f32 %v359, %v413
  %v416 = vmul.f32 %v360, %v413
  %v417 = vmul.f32 %v361, %v413
  %v418 = vmul.f32 %v362, %v413
  %v419 = vmul.f32 %v363, %v413
  %v420 = vmul.f32 %v364, %v413
  %v421 = vmul.f32 %v365, %v413
  %v422 = vmul.f32 %v366, %v413
  %v423 = vmul.f32 %v367, %v414
  %v424 = vmul.f32 %v368, %v414
  %v425 = vmul.f32 %v369, %v414
  %v426 = vmul.f32 %v370, %v414
  %v427 = vmul.f32 %v371, %v414
  %v428 = vmul.f32 %v372, %v414
  %v429 = vmul.f32 %v373, %v414
  %v430 = vmul.f32 %v374, %v414
  %vm431 = vcmp.ge.f32.partialorder %v415, 0.0
  %vm432 = vcmp.ge.f32.partialorder %v416, 0.0
  %vm433 = vcmp.ge.f32.partialorder %v417, 0.0
  %vm434 = vcmp.ge.f32.partialorder %v418, 0.0
  %vm435 = vcmp.ge.f32.partialorder %v419, 0.0
  %vm436 = vcmp.ge.f32.partialorder %v420, 0.0
  %vm437 = vcmp.ge.f32.partialorder %v421, 0.0
  %vm438 = vcmp.ge.f32.partialorder %v422, 0.0
  %vm439 = vcmp.ge.f32.partialorder %v423, 0.0
  %vm440 = vcmp.ge.f32.partialorder %v424, 0.0
  %vm441 = vcmp.ge.f32.partialorder %v425, 0.0
  %vm442 = vcmp.ge.f32.partialorder %v426, 0.0
  %vm443 = vcmp.ge.f32.partialorder %v427, 0.0
  %vm444 = vcmp.ge.f32.partialorder %v428, 0.0
  %vm445 = vcmp.ge.f32.partialorder %v429, 0.0
  %vm446 = vcmp.ge.f32.partialorder %v430, 0.0
  %v447 = vmul.f32 %v415, 0.2
  %v448 = vmul.f32 %v416, 0.2
  %v449 = vmul.f32 %v417, 0.2
  %v450 = vmul.f32 %v418, 0.2
  %v451 = vmul.f32 %v419, 0.2
  %v452 = vmul.f32 %v420, 0.2
  %v453 = vmul.f32 %v421, 0.2
  %v454 = vmul.f32 %v422, 0.2
  %v455 = vmul.f32 %v423, 0.2
  %v456 = vmul.f32 %v424, 0.2
  %v457 = vmul.f32 %v425, 0.2
  %v458 = vmul.f32 %v426, 0.2
  %v459 = vmul.f32 %v427, 0.2
  %v460 = vmul.f32 %v428, 0.2
  %v461 = vmul.f32 %v429, 0.2
  %v462 = vmul.f32 %v430, 0.2
  %v463 = vsel %vm431, %v415, %v447
  %v464 = vsel %vm432, %v416, %v448
  %v465 = vsel %vm433, %v417, %v449
  %v466 = vsel %vm434, %v418, %v450
  %v467 = vsel %vm435, %v419, %v451
  %v468 = vsel %vm436, %v420, %v452
  %v469 = vsel %vm437, %v421, %v453
  %v470 = vsel %vm438, %v422, %v454
  %v471 = vsel %vm439, %v423, %v455
  %v472 = vsel %vm440, %v424, %v456
  %v473 = vsel %vm441, %v425, %v457
  %v474 = vsel %vm442, %v426, %v458
  %v475 = vsel %vm443, %v427, %v459
  %v476 = vsel %vm444, %v428, %v460
  %v477 = vsel %vm445, %v429, %v461
  %v478 = vsel %vm446, %v430, %v462
  %v479 = vld [vmem:[%s2] sm:$0xff]
  %v480 = vld [vmem:[%s2 + $0x8] sm:$0xff]
  %v481 = vld [vmem:[%s2 + $0x10] sm:$0xff]
  %v482 = vld [vmem:[%s2 + $0x18] sm:$0xff]
  %vm483 = vcmask 130048
  %v485 = vsel %vm483, %v479, 0
  %v488 = vsel %vm483, %v480, 0
  %v491 = vsel %vm483, %v481, 0
  %v494 = vsel %vm483, %v482, 0
  %496 = vmatprep.subr.mxu0 %v464
  %497 = vmatpush1.msra.mxu0 %v463
  %498 = vmatprep.subr.mxu0 %v472
  %499 = vmatpush1.msra.mxu0 %v471
  %500 = vmatprep.subr.mxu0 0.0
  %501 = vmatpush1.msra.mxu0 0.0
  %502 = vmatprep.subr.mxu0 0.0
  %503 = vmatpush1.msra.mxu0 0.0
  %504 = vmatprep.subr.mxu0 0.0
  %505 = vmatpush1.msra.mxu0 0.0
  %506 = vmatprep.subr.mxu0 0.0
  %507 = vmatpush1.msra.mxu0 0.0
  %508 = vmatprep.subr.mxu0 0.0
  %509 = vmatpush1.msra.mxu0 0.0
  %510 = vmatprep.subr.mxu0 0.0
  %511 = vmatpush1.msra.mxu0 0.0
  %512 = vmatprep.subr.mxu0 0.0
  %513 = vmatpush1.msra.mxu0 0.0
  %514 = vmatprep.subr.mxu0 0.0
  %515 = vmatpush1.msra.mxu0 0.0
  %516 = vmatprep.subr.mxu0 0.0
  %517 = vmatpush1.msra.mxu0 0.0
  %518 = vmatprep.subr.mxu0 0.0
  %519 = vmatpush1.msra.mxu0 0.0
  %520 = vmatprep.subr.mxu0 0.0
  %521 = vmatpush1.msra.mxu0 0.0
  %522 = vmatprep.subr.mxu0 0.0
  %523 = vmatpush1.msra.mxu0 0.0
  %524 = vmatprep.subr.mxu0 0.0
  %525 = vmatpush1.msra.mxu0 0.0
  %526 = vmatprep.subr.mxu0 0.0
  %527 = vmatpush1.msra.mxu0 0.0
  %528 = vmatprep.subr.mxu0 0.0
  %529 = vmatpush1.msra.mxu0 0.0
  %530 = vmatprep.subr.mxu0 0.0
  %531 = vmatpush1.msra.mxu0 0.0
  %532 = vmatprep.subr.mxu0 0.0
  %533 = vmatpush1.msra.mxu0 0.0
  %534 = vmatprep.subr.mxu0 0.0
  %535 = vmatpush1.msra.mxu0 0.0
  %536 = vmatprep.subr.mxu0 0.0
  %537 = vmatpush1.msra.mxu0 0.0
  %538 = vmatprep.subr.mxu0 0.0
  %539 = vmatpush1.msra.mxu0 0.0
  %540 = vmatprep.subr.mxu0 0.0
  %541 = vmatpush1.msra.mxu0 0.0
  %542 = vmatprep.subr.mxu0 0.0
  %543 = vmatpush1.msra.mxu0 0.0
  %544 = vmatprep.subr.mxu0 0.0
  %545 = vmatpush1.msra.mxu0 0.0
  %546 = vmatprep.subr.mxu0 0.0
  %547 = vmatpush1.msra.mxu0 0.0
  %548 = vmatprep.subr.mxu0 0.0
  %549 = vmatpush1.msra.mxu0 0.0
  %550 = vmatprep.subr.mxu0 0.0
  %551 = vmatpush1.msra.mxu0 0.0
  %552 = vmatprep.subr.mxu0 0.0
  %553 = vmatpush1.msra.mxu0 0.0
  %554 = vmatprep.subr.mxu0 0.0
  %555 = vmatpush1.msra.mxu0 0.0
  %556 = vmatprep.subr.mxu0 0.0
  %557 = vmatpush1.msra.mxu0 0.0
  %558 = vmatprep.subr.mxu0 0.0
  %559 = vmatpush1.msra.mxu0 0.0
  %560 = vmatprep.mubr.f32.mxu0 0.0
  %561 = vmatmul.mubr.f32.gmra.mrb[0].mxu0 %v485
  %v562 = vpop.f32.mrb[0].mxu0
  %v563 = vadd.f32 0.0, %v562
  %v564 = vpop.f32.mrb[0].mxu0
  %v565 = vadd.f32 0.0, %v564
  %566 = vmatprep.mubr.f32.mxu0 0.0
  %567 = vmatmul.mubr.f32.gmra.mrb[0].mxu0 %v488
  %v568 = vpop.f32.mrb[0].mxu0
  %v569 = vadd.f32 0.0, %v568
  %v570 = vpop.f32.mrb[0].mxu0
  %v571 = vadd.f32 0.0, %v570
  %572 = vmatprep.mubr.f32.mxu0 0.0
  %573 = vmatmul.mubr.f32.gmra.mrb[0].mxu0 %v491
  %v574 = vpop.f32.mrb[0].mxu0
  %v575 = vadd.f32 0.0, %v574
  %v576 = vpop.f32.mrb[0].mxu0
  %v577 = vadd.f32 0.0, %v576
  %578 = vmatprep.mubr.f32.mxu0 0.0
  %579 = vmatmul.mubr.f32.gmra.mrb[0].mxu0 %v494
  %v580 = vpop.f32.mrb[0].mxu0
  %v581 = vadd.f32 0.0, %v580
  %v582 = vpop.f32.mrb[0].mxu0
  %v583 = vadd.f32 0.0, %v582
  %584 = vdwg.mxu0
  %585 = vmatprep.subr.mxu0 %v466
  %586 = vmatpush1.msra.mxu0 %v465
  %587 = vmatprep.subr.mxu0 %v474
  %588 = vmatpush1.msra.mxu0 %v473
  %589 = vmatprep.subr.mxu0 0.0
  %590 = vmatpush1.msra.mxu0 0.0
  %591 = vmatprep.subr.mxu0 0.0
  %592 = vmatpush1.msra.mxu0 0.0
  %593 = vmatprep.subr.mxu0 0.0
  %594 = vmatpush1.msra.mxu0 0.0
  %595 = vmatprep.subr.mxu0 0.0
  %596 = vmatpush1.msra.mxu0 0.0
  %597 = vmatprep.subr.mxu0 0.0
  %598 = vmatpush1.msra.mxu0 0.0
  %599 = vmatprep.subr.mxu0 0.0
  %600 = vmatpush1.msra.mxu0 0.0
  %601 = vmatprep.subr.mxu0 0.0
  %602 = vmatpush1.msra.mxu0 0.0
  %603 = vmatprep.subr.mxu0 0.0
  %604 = vmatpush1.msra.mxu0 0.0
  %605 = vmatprep.subr.mxu0 0.0
  %606 = vmatpush1.msra.mxu0 0.0
  %607 = vmatprep.subr.mxu0 0.0
  %608 = vmatpush1.msra.mxu0 0.0
  %609 = vmatprep.subr.mxu0 0.0
  %610 = vmatpush1.msra.mxu0 0.0
  %611 = vmatprep.subr.mxu0 0.0
  %612 = vmatpush1.msra.mxu0 0.0
  %613 = vmatprep.subr.mxu0 0.0
  %614 = vmatpush1.msra.mxu0 0.0
  %615 = vmatprep.subr.mxu0 0.0
  %616 = vmatpush1.msra.mxu0 0.0
  %617 = vmatprep.subr.mxu0 0.0
  %618 = vmatpush1.msra.mxu0 0.0
  %619 = vmatprep.subr.mxu0 0.0
  %620 = vmatpush1.msra.mxu0 0.0
  %621 = vmatprep.subr.mxu0 0.0
  %622 = vmatpush1.msra.mxu0 0.0
  %623 = vmatprep.subr.mxu0 0.0
  %624 = vmatpush1.msra.mxu0 0.0
  %625 = vmatprep.subr.mxu0 0.0
  %626 = vmatpush1.msra.mxu0 0.0
  %627 = vmatprep.subr.mxu0 0.0
  %628 = vmatpush1.msra.mxu0 0.0
  %629 = vmatprep.subr.mxu0 0.0
  %630 = vmatpush1.msra.mxu0 0.0
  %631 = vmatprep.subr.mxu0 0.0
  %632 = vmatpush1.msra.mxu0 0.0
  %633 = vmatprep.subr.mxu0 0.0
  %634 = vmatpush1.msra.mxu0 0.0
  %635 = vmatprep.subr.mxu0 0.0
  %636 = vmatpush1.msra.mxu0 0.0
  %637 = vmatprep.subr.mxu0 0.0
  %638 = vmatpush1.msra.mxu0 0.0
  %639 = vmatprep.subr.mxu0 0.0
  %640 = vmatpush1.msra.mxu0 0.0
  %641 = vmatprep.subr.mxu0 0.0
  %642 = vmatpush1.msra.mxu0 0.0
  %643 = vmatprep.subr.mxu0 0.0
  %644 = vmatpush1.msra.mxu0 0.0
  %645 = vmatprep.subr.mxu0 0.0
  %646 = vmatpush1.msra.mxu0 0.0
  %647 = vmatprep.subr.mxu0 0.0
  %648 = vmatpush1.msra.mxu0 0.0
  %649 = vmatprep.mubr.f32.mxu0 0.0
  %650 = vmatmul.mubr.f32.gmra.mrb[0].mxu0 %v485
  %v651 = vpop.f32.mrb[0].mxu0
  %v652 = vadd.f32 0.0, %v651
  %v653 = vpop.f32.mrb[0].mxu0
  %v654 = vadd.f32 0.0, %v653
  %655 = vmatprep.mubr.f32.mxu0 0.0
  %656 = vmatmul.mubr.f32.gmra.mrb[0].mxu0 %v488
  %v657 = vpop.f32.mrb[0].mxu0
  %v658 = vadd.f32 0.0, %v657
  %v659 = vpop.f32.mrb[0].mxu0
  %v660 = vadd.f32 0.0, %v659
  %661 = vmatprep.mubr.f32.mxu0 0.0
  %662 = vmatmul.mubr.f32.gmra.mrb[0].mxu0 %v491
  %v663 = vpop.f32.mrb[0].mxu0
  %v664 = vadd.f32 0.0, %v663
  %v665 = vpop.f32.mrb[0].mxu0
  %v666 = vadd.f32 0.0, %v665
  %667 = vmatprep.mubr.f32.mxu0 0.0
  %668 = vmatmul.mubr.f32.gmra.mrb[0].mxu0 %v494
  %v669 = vpop.f32.mrb[0].mxu0
  %v670 = vadd.f32 0.0, %v669
  %v671 = vpop.f32.mrb[0].mxu0
  %v672 = vadd.f32 0.0, %v671
  %673 = vdwg.mxu0
  %674 = vmatprep.subr.mxu0 %v468
  %675 = vmatpush1.msra.mxu0 %v467
  %676 = vmatprep.subr.mxu0 %v476
  %677 = vmatpush1.msra.mxu0 %v475
  %678 = vmatprep.subr.mxu0 0.0
  %679 = vmatpush1.msra.mxu0 0.0
  %680 = vmatprep.subr.mxu0 0.0
  %681 = vmatpush1.msra.mxu0 0.0
  %682 = vmatprep.subr.mxu0 0.0
  %683 = vmatpush1.msra.mxu0 0.0
  %684 = vmatprep.subr.mxu0 0.0
  %685 = vmatpush1.msra.mxu0 0.0
  %686 = vmatprep.subr.mxu0 0.0
  %687 = vmatpush1.msra.mxu0 0.0
  %688 = vmatprep.subr.mxu0 0.0
  %689 = vmatpush1.msra.mxu0 0.0
  %690 = vmatprep.subr.mxu0 0.0
  %691 = vmatpush1.msra.mxu0 0.0
  %692 = vmatprep.subr.mxu0 0.0
  %693 = vmatpush1.msra.mxu0 0.0
  %694 = vmatprep.subr.mxu0 0.0
  %695 = vmatpush1.msra.mxu0 0.0
  %696 = vmatprep.subr.mxu0 0.0
  %697 = vmatpush1.msra.mxu0 0.0
  %698 = vmatprep.subr.mxu0 0.0
  %699 = vmatpush1.msra.mxu0 0.0
  %700 = vmatprep.subr.mxu0 0.0
  %701 = vmatpush1.msra.mxu0 0.0
  %702 = vmatprep.subr.mxu0 0.0
  %703 = vmatpush1.msra.mxu0 0.0
  %704 = vmatprep.subr.mxu0 0.0
  %705 = vmatpush1.msra.mxu0 0.0
  %706 = vmatprep.subr.mxu0 0.0
  %707 = vmatpush1.msra.mxu0 0.0
  %708 = vmatprep.subr.mxu0 0.0
  %709 = vmatpush1.msra.mxu0 0.0
  %710 = vmatprep.subr.mxu0 0.0
  %711 = vmatpush1.msra.mxu0 0.0
  %712 = vmatprep.subr.mxu0 0.0
  %713 = vmatpush1.msra.mxu0 0.0
  %714 = vmatprep.subr.mxu0 0.0
  %715 = vmatpush1.msra.mxu0 0.0
  %716 = vmatprep.subr.mxu0 0.0
  %717 = vmatpush1.msra.mxu0 0.0
  %718 = vmatprep.subr.mxu0 0.0
  %719 = vmatpush1.msra.mxu0 0.0
  %720 = vmatprep.subr.mxu0 0.0
  %721 = vmatpush1.msra.mxu0 0.0
  %722 = vmatprep.subr.mxu0 0.0
  %723 = vmatpush1.msra.mxu0 0.0
  %724 = vmatprep.subr.mxu0 0.0
  %725 = vmatpush1.msra.mxu0 0.0
  %726 = vmatprep.subr.mxu0 0.0
  %727 = vmatpush1.msra.mxu0 0.0
  %728 = vmatprep.subr.mxu0 0.0
  %729 = vmatpush1.msra.mxu0 0.0
  %730 = vmatprep.subr.mxu0 0.0
  %731 = vmatpush1.msra.mxu0 0.0
  %732 = vmatprep.subr.mxu0 0.0
  %733 = vmatpush1.msra.mxu0 0.0
  %734 = vmatprep.subr.mxu0 0.0
  %735 = vmatpush1.msra.mxu0 0.0
  %736 = vmatprep.subr.mxu0 0.0
  %737 = vmatpush1.msra.mxu0 0.0
  %738 = vmatprep.mubr.f32.mxu0 0.0
  %739 = vmatmul.mubr.f32.gmra.mrb[0].mxu0 %v485
  %v740 = vpop.f32.mrb[0].mxu0
  %v741 = vadd.f32 0.0, %v740
  %v742 = vpop.f32.mrb[0].mxu0
  %v743 = vadd.f32 0.0, %v742
  %744 = vmatprep.mubr.f32.mxu0 0.0
  %745 = vmatmul.mubr.f32.gmra.mrb[0].mxu0 %v488
  %v746 = vpop.f32.mrb[0].mxu0
  %v747 = vadd.f32 0.0, %v746
  %v748 = vpop.f32.mrb[0].mxu0
  %v749 = vadd.f32 0.0, %v748
  %750 = vmatprep.mubr.f32.mxu0 0.0
  %751 = vmatmul.mubr.f32.gmra.mrb[0].mxu0 %v491
  %v752 = vpop.f32.mrb[0].mxu0
  %v753 = vadd.f32 0.0, %v752
  %v754 = vpop.f32.mrb[0].mxu0
  %v755 = vadd.f32 0.0, %v754
  %756 = vmatprep.mubr.f32.mxu0 0.0
  %757 = vmatmul.mubr.f32.gmra.mrb[0].mxu0 %v494
  %v758 = vpop.f32.mrb[0].mxu0
  %v759 = vadd.f32 0.0, %v758
  %v760 = vpop.f32.mrb[0].mxu0
  %v761 = vadd.f32 0.0, %v760
  %762 = vdwg.mxu0
  %763 = vmatprep.subr.mxu0 %v470
  %764 = vmatpush1.msra.mxu0 %v469
  %765 = vmatprep.subr.mxu0 %v478
  %766 = vmatpush1.msra.mxu0 %v477
  %767 = vmatprep.subr.mxu0 0.0
  %768 = vmatpush1.msra.mxu0 0.0
  %769 = vmatprep.subr.mxu0 0.0
  %770 = vmatpush1.msra.mxu0 0.0
  %771 = vmatprep.subr.mxu0 0.0
  %772 = vmatpush1.msra.mxu0 0.0
  %773 = vmatprep.subr.mxu0 0.0
  %774 = vmatpush1.msra.mxu0 0.0
  %775 = vmatprep.subr.mxu0 0.0
  %776 = vmatpush1.msra.mxu0 0.0
  %777 = vmatprep.subr.mxu0 0.0
  %778 = vmatpush1.msra.mxu0 0.0
  %779 = vmatprep.subr.mxu0 0.0
  %780 = vmatpush1.msra.mxu0 0.0
  %781 = vmatprep.subr.mxu0 0.0
  %782 = vmatpush1.msra.mxu0 0.0
  %783 = vmatprep.subr.mxu0 0.0
  %784 = vmatpush1.msra.mxu0 0.0
  %785 = vmatprep.subr.mxu0 0.0
  %786 = vmatpush1.msra.mxu0 0.0
  %787 = vmatprep.subr.mxu0 0.0
  %788 = vmatpush1.msra.mxu0 0.0
  %789 = vmatprep.subr.mxu0 0.0
  %790 = vmatpush1.msra.mxu0 0.0
  %791 = vmatprep.subr.mxu0 0.0
  %792 = vmatpush1.msra.mxu0 0.0
  %793 = vmatprep.subr.mxu0 0.0
  %794 = vmatpush1.msra.mxu0 0.0
  %795 = vmatprep.subr.mxu0 0.0
  %796 = vmatpush1.msra.mxu0 0.0
  %797 = vmatprep.subr.mxu0 0.0
  %798 = vmatpush1.msra.mxu0 0.0
  %799 = vmatprep.subr.mxu0 0.0
  %800 = vmatpush1.msra.mxu0 0.0
  %801 = vmatprep.subr.mxu0 0.0
  %802 = vmatpush1.msra.mxu0 0.0
  %803 = vmatprep.subr.mxu0 0.0
  %804 = vmatpush1.msra.mxu0 0.0
  %805 = vmatprep.subr.mxu0 0.0
  %806 = vmatpush1.msra.mxu0 0.0
  %807 = vmatprep.subr.mxu0 0.0
  %808 = vmatpush1.msra.mxu0 0.0
  %809 = vmatprep.subr.mxu0 0.0
  %810 = vmatpush1.msra.mxu0 0.0
  %811 = vmatprep.subr.mxu0 0.0
  %812 = vmatpush1.msra.mxu0 0.0
  %813 = vmatprep.subr.mxu0 0.0
  %814 = vmatpush1.msra.mxu0 0.0
  %815 = vmatprep.subr.mxu0 0.0
  %816 = vmatpush1.msra.mxu0 0.0
  %817 = vmatprep.subr.mxu0 0.0
  %818 = vmatpush1.msra.mxu0 0.0
  %819 = vmatprep.subr.mxu0 0.0
  %820 = vmatpush1.msra.mxu0 0.0
  %821 = vmatprep.subr.mxu0 0.0
  %822 = vmatpush1.msra.mxu0 0.0
  %823 = vmatprep.subr.mxu0 0.0
  %824 = vmatpush1.msra.mxu0 0.0
  %825 = vmatprep.subr.mxu0 0.0
  %826 = vmatpush1.msra.mxu0 0.0
  %827 = vmatprep.mubr.f32.mxu0 0.0
  %828 = vmatmul.mubr.f32.gmra.mrb[0].mxu0 %v485
  %v829 = vpop.f32.mrb[0].mxu0
  %v830 = vadd.f32 0.0, %v829
  %v831 = vpop.f32.mrb[0].mxu0
  %v832 = vadd.f32 0.0, %v831
  %833 = vmatprep.mubr.f32.mxu0 0.0
  %834 = vmatmul.mubr.f32.gmra.mrb[0].mxu0 %v488
  %v835 = vpop.f32.mrb[0].mxu0
  %v836 = vadd.f32 0.0, %v835
  %v837 = vpop.f32.mrb[0].mxu0
  %v838 = vadd.f32 0.0, %v837
  %839 = vmatprep.mubr.f32.mxu0 0.0
  %840 = vmatmul.mubr.f32.gmra.mrb[0].mxu0 %v491
  %v841 = vpop.f32.mrb[0].mxu0
  %v842 = vadd.f32 0.0, %v841
  %v843 = vpop.f32.mrb[0].mxu0
  %v844 = vadd.f32 0.0, %v843
  %845 = vmatprep.mubr.f32.mxu0 0.0
  %846 = vmatmul.mubr.f32.gmra.mrb[0].mxu0 %v494
  %v847 = vpop.f32.mrb[0].mxu0
  %v848 = vadd.f32 0.0, %v847
  %v849 = vpop.f32.mrb[0].mxu0
  %v850 = vadd.f32 0.0, %v849
  %851 = vdwg.mxu0
  %v852 = vadd.f32 %v563, %v565
  %v853 = vadd.f32 %v852, %v652
  %v854 = vadd.f32 %v853, %v654
  %v855 = vadd.f32 %v854, %v741
  %v856 = vadd.f32 %v855, %v743
  %v857 = vadd.f32 %v856, %v830
  %v858 = vadd.f32 %v857, %v832
  %859 = vadd.xlane.f32.xlu0 %v858
  %v860 = vpop.xlane.xlu0 %859
  %v861 = vadd.f32 %v569, %v571
  %v862 = vadd.f32 %v861, %v658
  %v863 = vadd.f32 %v862, %v660
  %v864 = vadd.f32 %v863, %v747
  %v865 = vadd.f32 %v864, %v749
  %v866 = vadd.f32 %v865, %v836
  %v867 = vadd.f32 %v866, %v838
  %868 = vadd.xlane.f32.xlu0 %v867
  %v869 = vpop.xlane.xlu0 %868
  %v870 = vadd.f32 %v575, %v577
  %v871 = vadd.f32 %v870, %v664
  %v872 = vadd.f32 %v871, %v666
  %v873 = vadd.f32 %v872, %v753
  %v874 = vadd.f32 %v873, %v755
  %v875 = vadd.f32 %v874, %v842
  %v876 = vadd.f32 %v875, %v844
  %877 = vadd.xlane.f32.xlu0 %v876
  %v878 = vpop.xlane.xlu0 %877
  %v879 = vadd.f32 %v581, %v583
  %v880 = vadd.f32 %v879, %v670
  %v881 = vadd.f32 %v880, %v672
  %v882 = vadd.f32 %v881, %v759
  %v883 = vadd.f32 %v882, %v761
  %v884 = vadd.f32 %v883, %v848
  %v885 = vadd.f32 %v884, %v850
  %886 = vadd.xlane.f32.xlu0 %v885
  %v887 = vpop.xlane.xlu0 %886
  %v888 = vmul.f32 %v860, 0.0009765625
  %v889 = vmul.f32 %v869, 0.0009765625
  %v890 = vmul.f32 %v878, 0.0009765625
  %v891 = vmul.f32 %v887, 0.0009765625
  %v892 = vsub.f32 %v563, %v888
  %v893 = vsub.f32 %v565, %v888
  %v894 = vsub.f32 %v652, %v888
  %v895 = vsub.f32 %v654, %v888
  %v896 = vsub.f32 %v741, %v888
  %v897 = vsub.f32 %v743, %v888
  %v898 = vsub.f32 %v830, %v888
  %v899 = vsub.f32 %v832, %v888
  %v900 = vsub.f32 %v569, %v889
  %v901 = vsub.f32 %v571, %v889
  %v902 = vsub.f32 %v658, %v889
  %v903 = vsub.f32 %v660, %v889
  %v904 = vsub.f32 %v747, %v889
  %v905 = vsub.f32 %v749, %v889
  %v906 = vsub.f32 %v836, %v889
  %v907 = vsub.f32 %v838, %v889
  %v908 = vsub.f32 %v575, %v890
  %v909 = vsub.f32 %v577, %v890
  %v910 = vsub.f32 %v664, %v890
  %v911 = vsub.f32 %v666, %v890
  %v912 = vsub.f32 %v753, %v890
  %v913 = vsub.f32 %v755, %v890
  %v914 = vsub.f32 %v842, %v890
  %v915 = vsub.f32 %v844, %v890
  %v916 = vsub.f32 %v581, %v891
  %v917 = vsub.f32 %v583, %v891
  %v918 = vsub.f32 %v670, %v891
  %v919 = vsub.f32 %v672, %v891
  %v920 = vsub.f32 %v759, %v891
  %v921 = vsub.f32 %v761, %v891
  %v922 = vsub.f32 %v848, %v891
  %v923 = vsub.f32 %v850, %v891
  %v924 = vmul.f32 %v892, %v892
  %v925 = vmul.f32 %v893, %v893
  %v926 = vmul.f32 %v894, %v894
  %v927 = vmul.f32 %v895, %v895
  %v928 = vmul.f32 %v896, %v896
  %v929 = vmul.f32 %v897, %v897
  %v930 = vmul.f32 %v898, %v898
  %v931 = vmul.f32 %v899, %v899
  %v932 = vmul.f32 %v900, %v900
  %v933 = vmul.f32 %v901, %v901
  %v934 = vmul.f32 %v902, %v902
  %v935 = vmul.f32 %v903, %v903
  %v936 = vmul.f32 %v904, %v904
  %v937 = vmul.f32 %v905, %v905
  %v938 = vmul.f32 %v906, %v906
  %v939 = vmul.f32 %v907, %v907
  %v940 = vmul.f32 %v908, %v908
  %v941 = vmul.f32 %v909, %v909
  %v942 = vmul.f32 %v910, %v910
  %v943 = vmul.f32 %v911, %v911
  %v944 = vmul.f32 %v912, %v912
  %v945 = vmul.f32 %v913, %v913
  %v946 = vmul.f32 %v914, %v914
  %v947 = vmul.f32 %v915, %v915
  %v948 = vmul.f32 %v916, %v916
  %v949 = vmul.f32 %v917, %v917
  %v950 = vmul.f32 %v918, %v918
  %v951 = vmul.f32 %v919, %v919
  %v952 = vmul.f32 %v920, %v920
  %v953 = vmul.f32 %v921, %v921
  %v954 = vmul.f32 %v922, %v922
  %v955 = vmul.f32 %v923, %v923
  %v956 = vadd.f32 %v924, %v925
  %v957 = vadd.f32 %v956, %v926
  %v958 = vadd.f32 %v957, %v927
  %v959 = vadd.f32 %v958, %v928
  %v960 = vadd.f32 %v959, %v929
  %v961 = vadd.f32 %v960, %v930
  %v962 = vadd.f32 %v961, %v931
  %963 = vadd.xlane.f32.xlu0 %v962
  %v964 = vpop.xlane.xlu0 %963
  %v965 = vadd.f32 %v932, %v933
  %v966 = vadd.f32 %v965, %v934
  %v967 = vadd.f32 %v966, %v935
  %v968 = vadd.f32 %v967, %v936
  %v969 = vadd.f32 %v968, %v937
  %v970 = vadd.f32 %v969, %v938
  %v971 = vadd.f32 %v970, %v939
  %972 = vadd.xlane.f32.xlu0 %v971
  %v973 = vpop.xlane.xlu0 %972
  %v974 = vadd.f32 %v940, %v941
  %v975 = vadd.f32 %v974, %v942
  %v976 = vadd.f32 %v975, %v943
  %v977 = vadd.f32 %v976, %v944
  %v978 = vadd.f32 %v977, %v945
  %v979 = vadd.f32 %v978, %v946
  %v980 = vadd.f32 %v979, %v947
  %981 = vadd.xlane.f32.xlu0 %v980
  %v982 = vpop.xlane.xlu0 %981
  %v983 = vadd.f32 %v948, %v949
  %v984 = vadd.f32 %v983, %v950
  %v985 = vadd.f32 %v984, %v951
  %v986 = vadd.f32 %v985, %v952
  %v987 = vadd.f32 %v986, %v953
  %v988 = vadd.f32 %v987, %v954
  %v989 = vadd.f32 %v988, %v955
  %990 = vadd.xlane.f32.xlu0 %v989
  %v991 = vpop.xlane.xlu0 %990
  %v992 = vmul.f32 %v964, 0.0009765625
  %v993 = vmul.f32 %v973, 0.0009765625
  %v994 = vmul.f32 %v982, 0.0009765625
  %v995 = vmul.f32 %v991, 0.0009765625
  %v996 = vadd.f32 %v992, 1e-05
  %v997 = vadd.f32 %v993, 1e-05
  %v998 = vadd.f32 %v994, 1e-05
  %v999 = vadd.f32 %v995, 1e-05
  %v1000 = vrsqrt.pop %v996
  %v1001 = vrsqrt.pop %v997
  %v1002 = vrsqrt.pop %v998
  %v1003 = vrsqrt.pop %v999
  %v1004 = vmul.f32 %v892, %v1000
  %v1005 = vmul.f32 %v893, %v1000
  %v1006 = vmul.f32 %v894, %v1000
  %v1007 = vmul.f32 %v895, %v1000
  %v1008 = vmul.f32 %v896, %v1000
  %v1009 = vmul.f32 %v897, %v1000
  %v1010 = vmul.f32 %v898, %v1000
  %v1011 = vmul.f32 %v899, %v1000
  %v1012 = vmul.f32 %v900, %v1001
  %v1013 = vmul.f32 %v901, %v1001
  %v1014 = vmul.f32 %v902, %v1001
  %v1015 = vmul.f32 %v903, %v1001
  %v1016 = vmul.f32 %v904, %v1001
  %v1017 = vmul.f32 %v905, %v1001
  %v1018 = vmul.f32 %v906, %v1001
  %v1019 = vmul.f32 %v907, %v1001
  %v1020 = vmul.f32 %v908, %v1002
  %v1021 = vmul.f32 %v909, %v1002
  %v1022 = vmul.f32 %v910, %v1002
  %v1023 = vmul.f32 %v911, %v1002
  %v1024 = vmul.f32 %v912, %v1002
  %v1025 = vmul.f32 %v913, %v1002
  %v1026 = vmul.f32 %v914, %v1002
  %v1027 = vmul.f32 %v915, %v1002
  %v1028 = vmul.f32 %v916, %v1003
  %v1029 = vmul.f32 %v917, %v1003
  %v1030 = vmul.f32 %v918, %v1003
  %v1031 = vmul.f32 %v919, %v1003
  %v1032 = vmul.f32 %v920, %v1003
  %v1033 = vmul.f32 %v921, %v1003
  %v1034 = vmul.f32 %v922, %v1003
  %v1035 = vmul.f32 %v923, %v1003
  %vm1036 = vcmp.ge.f32.partialorder %v1004, 0.0
  %vm1037 = vcmp.ge.f32.partialorder %v1005, 0.0
  %vm1038 = vcmp.ge.f32.partialorder %v1006, 0.0
  %vm1039 = vcmp.ge.f32.partialorder %v1007, 0.0
  %vm1040 = vcmp.ge.f32.partialorder %v1008, 0.0
  %vm1041 = vcmp.ge.f32.partialorder %v1009, 0.0
  %vm1042 = vcmp.ge.f32.partialorder %v1010, 0.0
  %vm1043 = vcmp.ge.f32.partialorder %v1011, 0.0
  %vm1044 = vcmp.ge.f32.partialorder %v1012, 0.0
  %vm1045 = vcmp.ge.f32.partialorder %v1013, 0.0
  %vm1046 = vcmp.ge.f32.partialorder %v1014, 0.0
  %vm1047 = vcmp.ge.f32.partialorder %v1015, 0.0
  %vm1048 = vcmp.ge.f32.partialorder %v1016, 0.0
  %vm1049 = vcmp.ge.f32.partialorder %v1017, 0.0
  %vm1050 = vcmp.ge.f32.partialorder %v1018, 0.0
  %vm1051 = vcmp.ge.f32.partialorder %v1019, 0.0
  %vm1052 = vcmp.ge.f32.partialorder %v1020, 0.0
  %vm1053 = vcmp.ge.f32.partialorder %v1021, 0.0
  %vm1054 = vcmp.ge.f32.partialorder %v1022, 0.0
  %vm1055 = vcmp.ge.f32.partialorder %v1023, 0.0
  %vm1056 = vcmp.ge.f32.partialorder %v1024, 0.0
  %vm1057 = vcmp.ge.f32.partialorder %v1025, 0.0
  %vm1058 = vcmp.ge.f32.partialorder %v1026, 0.0
  %vm1059 = vcmp.ge.f32.partialorder %v1027, 0.0
  %vm1060 = vcmp.ge.f32.partialorder %v1028, 0.0
  %vm1061 = vcmp.ge.f32.partialorder %v1029, 0.0
  %vm1062 = vcmp.ge.f32.partialorder %v1030, 0.0
  %vm1063 = vcmp.ge.f32.partialorder %v1031, 0.0
  %vm1064 = vcmp.ge.f32.partialorder %v1032, 0.0
  %vm1065 = vcmp.ge.f32.partialorder %v1033, 0.0
  %vm1066 = vcmp.ge.f32.partialorder %v1034, 0.0
  %vm1067 = vcmp.ge.f32.partialorder %v1035, 0.0
  %v1068 = vmul.f32 %v1004, 0.2
  %v1069 = vmul.f32 %v1005, 0.2
  %v1070 = vmul.f32 %v1006, 0.2
  %v1071 = vmul.f32 %v1007, 0.2
  %v1072 = vmul.f32 %v1008, 0.2
  %v1073 = vmul.f32 %v1009, 0.2
  %v1074 = vmul.f32 %v1010, 0.2
  %v1075 = vmul.f32 %v1011, 0.2
  %v1076 = vmul.f32 %v1012, 0.2
  %v1077 = vmul.f32 %v1013, 0.2
  %v1078 = vmul.f32 %v1014, 0.2
  %v1079 = vmul.f32 %v1015, 0.2
  %v1080 = vmul.f32 %v1016, 0.2
  %v1081 = vmul.f32 %v1017, 0.2
  %v1082 = vmul.f32 %v1018, 0.2
  %v1083 = vmul.f32 %v1019, 0.2
  %v1084 = vmul.f32 %v1020, 0.2
  %v1085 = vmul.f32 %v1021, 0.2
  %v1086 = vmul.f32 %v1022, 0.2
  %v1087 = vmul.f32 %v1023, 0.2
  %v1088 = vmul.f32 %v1024, 0.2
  %v1089 = vmul.f32 %v1025, 0.2
  %v1090 = vmul.f32 %v1026, 0.2
  %v1091 = vmul.f32 %v1027, 0.2
  %v1092 = vmul.f32 %v1028, 0.2
  %v1093 = vmul.f32 %v1029, 0.2
  %v1094 = vmul.f32 %v1030, 0.2
  %v1095 = vmul.f32 %v1031, 0.2
  %v1096 = vmul.f32 %v1032, 0.2
  %v1097 = vmul.f32 %v1033, 0.2
  %v1098 = vmul.f32 %v1034, 0.2
  %v1099 = vmul.f32 %v1035, 0.2
  %v1100 = vsel %vm1036, %v1004, %v1068
  %v1101 = vsel %vm1037, %v1005, %v1069
  %v1102 = vsel %vm1038, %v1006, %v1070
  %v1103 = vsel %vm1039, %v1007, %v1071
  %v1104 = vsel %vm1040, %v1008, %v1072
  %v1105 = vsel %vm1041, %v1009, %v1073
  %v1106 = vsel %vm1042, %v1010, %v1074
  %v1107 = vsel %vm1043, %v1011, %v1075
  %v1108 = vsel %vm1044, %v1012, %v1076
  %v1109 = vsel %vm1045, %v1013, %v1077
  %v1110 = vsel %vm1046, %v1014, %v1078
  %v1111 = vsel %vm1047, %v1015, %v1079
  %v1112 = vsel %vm1048, %v1016, %v1080
  %v1113 = vsel %vm1049, %v1017, %v1081
  %v1114 = vsel %vm1050, %v1018, %v1082
  %v1115 = vsel %vm1051, %v1019, %v1083
  %v1116 = vsel %vm1052, %v1020, %v1084
  %v1117 = vsel %vm1053, %v1021, %v1085
  %v1118 = vsel %vm1054, %v1022, %v1086
  %v1119 = vsel %vm1055, %v1023, %v1087
  %v1120 = vsel %vm1056, %v1024, %v1088
  %v1121 = vsel %vm1057, %v1025, %v1089
  %v1122 = vsel %vm1058, %v1026, %v1090
  %v1123 = vsel %vm1059, %v1027, %v1091
  %v1124 = vsel %vm1060, %v1028, %v1092
  %v1125 = vsel %vm1061, %v1029, %v1093
  %v1126 = vsel %vm1062, %v1030, %v1094
  %v1127 = vsel %vm1063, %v1031, %v1095
  %v1128 = vsel %vm1064, %v1032, %v1096
  %v1129 = vsel %vm1065, %v1033, %v1097
  %v1130 = vsel %vm1066, %v1034, %v1098
  %v1131 = vsel %vm1067, %v1035, %v1099
  %1132 = vst [vmem:[%s3] sm:$0xff] %v1100
  %1133 = vst [vmem:[%s3 + $0x8] sm:$0xff] %v1101
  %1134 = vst [vmem:[%s3 + $0x10] sm:$0xff] %v1102
  %1135 = vst [vmem:[%s3 + $0x18] sm:$0xff] %v1103
  %1136 = vst [vmem:[%s3 + $0x20] sm:$0xff] %v1104
  %1137 = vst [vmem:[%s3 + $0x28] sm:$0xff] %v1105
  %1138 = vst [vmem:[%s3 + $0x30] sm:$0xff] %v1106
  %1139 = vst [vmem:[%s3 + $0x38] sm:$0xff] %v1107
  %1140 = vst [vmem:[%s3 + $0x40] sm:$0xff] %v1108
  %1141 = vst [vmem:[%s3 + $0x48] sm:$0xff] %v1109
  %1142 = vst [vmem:[%s3 + $0x50] sm:$0xff] %v1110
  %1143 = vst [vmem:[%s3 + $0x58] sm:$0xff] %v1111
  %1144 = vst [vmem:[%s3 + $0x60] sm:$0xff] %v1112
  %1145 = vst [vmem:[%s3 + $0x68] sm:$0xff] %v1113
  %1146 = vst [vmem:[%s3 + $0x70] sm:$0xff] %v1114
  %1147 = vst [vmem:[%s3 + $0x78] sm:$0xff] %v1115
  %1148 = vst [vmem:[%s3 + $0x80] sm:$0xff] %v1116
  %1149 = vst [vmem:[%s3 + $0x88] sm:$0xff] %v1117
  %1150 = vst [vmem:[%s3 + $0x90] sm:$0xff] %v1118
  %1151 = vst [vmem:[%s3 + $0x98] sm:$0xff] %v1119
  %1152 = vst [vmem:[%s3 + $0xa0] sm:$0xff] %v1120
  %1153 = vst [vmem:[%s3 + $0xa8] sm:$0xff] %v1121
  %1154 = vst [vmem:[%s3 + $0xb0] sm:$0xff] %v1122
  %1155 = vst [vmem:[%s3 + $0xb8] sm:$0xff] %v1123
  %1156 = vst [vmem:[%s3 + $0xc0] sm:$0xff] %v1124
  %1157 = vst [vmem:[%s3 + $0xc8] sm:$0xff] %v1125
  %1158 = vst [vmem:[%s3 + $0xd0] sm:$0xff] %v1126
  %1159 = vst [vmem:[%s3 + $0xd8] sm:$0xff] %v1127
  %1160 = vst [vmem:[%s3 + $0xe0] sm:$0xff] %v1128
  %1161 = vst [vmem:[%s3 + $0xe8] sm:$0xff] %v1129
  %1162 = vst [vmem:[%s3 + $0xf0] sm:$0xff] %v1130
  %1163 = vst [vmem:[%s3 + $0xf8] sm:$0xff] %v1131
  // Predicated region
  $region14: #{a_call__.1} parent=0 // pred_check
    _
  $region15: #{a_call__.1} parent=0 // pred_check_branch
    %1165 = sbr.rel (0) target = $region17
  $region16: #{a_call__.1} parent=0 // pred_region
    _
  $region17: #{a_call__.1} parent=0 // pred_fallthru
    _
  // Predicated region
  $region18: #{a_call__.1} parent=0 // pred_check
    _
  $region19: #{a_call__.1} parent=0 // pred_check_branch
    %1167 = sbr.rel (0) target = $region21
  $region20: #{a_call__.1} parent=0 // pred_region
    _
  $region21: #{a_call__.1} parent=0 // pred_fallthru
    _

</llo_original>
